<compile_context>
chip_gen: v7x
topology: tpu7x:2x2x1
jax: 0.10.0
libtpu: 0.0.40
codegen_flags: <defaults>
</compile_context>

<pallas_src>
import functools

import jax
import jax.numpy as jnp
from jax import lax
from jax.experimental import pallas as pl
from jax.experimental.pallas import tpu as pltpu


def _gumbel_quant_kernel(z_ref, w_ref, b_ref, g_ref, zq_ref, codes_ref, *, kp):
    # Linear projection on the MXU: (tm, D) @ (D, Kp), f32 accumulation.
    logits = jnp.dot(z_ref[...], w_ref[...], preferred_element_type=jnp.float32)
    scores = logits + b_ref[...] + g_ref[...]

    # First-index argmax (matches torch.argmax / jnp.argmax tie-breaking) via
    # compare/select + lane reduce.  Single pass; no transposed duplicate.
    iota = lax.broadcasted_iota(jnp.int32, scores.shape, 1)
    mx = jnp.max(scores, axis=-1, keepdims=True)
    idx = jnp.min(jnp.where(scores >= mx, iota, kp), axis=-1, keepdims=True)

    zq_ref[...] = (iota == idx).astype(zq_ref.dtype)   # hard one-hot forward value
    codes_ref[...] = idx                                # (tm, 1) int32 column


def _const_block_spec(shape):
    """BlockSpec for a grid-invariant operand; single-buffered to save VMEM."""
    index_map = lambda i: (0,) * len(shape)
    try:
        return pl.BlockSpec(shape, index_map, pipeline_mode=pl.Buffered(1))
    except Exception:  # older jax without pipeline_mode / Buffered
        return pl.BlockSpec(shape, index_map)


def _vmem_budget_bytes():
    cap = 128 * 1024 * 1024
    try:
        info = pltpu.get_tpu_info()
        cap = int(getattr(info, "vmem_capacity_bytes", cap))
    except Exception:
        pass
    # Leave headroom: ~3/4 of physical (v5e/v6e -> 96 MiB, v7x -> 48 MiB).
    return min((cap * 3) // 4, 96 * 1024 * 1024)


def _auto_row_tile(n, d, kp, in_itemsize, zq_itemsize, vmem_budget):
    tile = 128
    for tm in (1024, 512, 256, 128):
        per_step = (2 * tm * d * in_itemsize        # z tile, double-buffered
                    + 2 * tm * kp * 4               # gumbel noise, double-buffered
                    + 2 * tm * kp * zq_itemsize     # z_q out, double-buffered
                    + 2 * tm * 4                    # codes out
                    + d * kp * in_itemsize + kp * 4  # W + bias, single-buffered
                    + 2 * tm * kp * 4)              # f32 scores / one-hot live values
        if per_step <= int(vmem_budget * 0.8):
            tile = tm
            break
    # Keep at least 2 grid tiles when rows allow (v7x has 2 TensorCores).
    while tile > 128 and n <= tile:
        tile //= 2
    return tile


def gumbel_quantizer_forward(z_e, weight, bias, key=None, *, temperature=1.0,
                             mask=None, row_tile=None,
                             matmul_dtype=jnp.bfloat16, zq_dtype=jnp.bfloat16,
                             gumbel_noise=None, vmem_limit_bytes=None):
    """Forward of GumbelQuantizer (straight_through=True).

    z_e: (B, T, D) f32; weight: (K, D); bias: (K,); key seeds jax.random.gumbel.
    gumbel_noise: optional precomputed (B*T, K) noise (debug / repro path).
    Returns (loss, z_q, perplexity, gumbel_softmax, codes) with the same forward
    values as the PyTorch module.  `temperature` only scales the soft/backward
    path, so it does not affect the hard forward value and is unused here.
    """
    B, T, D = z_e.shape
    K = weight.shape[0]
    N = B * T
    Kp = ((K + 127) // 128) * 128          # lane-dense z_q store / full MXU width

    z2 = z_e.reshape(N, D).astype(matmul_dtype)

    w = weight
    b = bias.astype(jnp.float32)
    if Kp != K:
        w = jnp.pad(w, ((0, Kp - K), (0, 0)))
        b = jnp.pad(b, ((0, Kp - K),), constant_values=-1e30)  # padded lanes never win
    w_t = w.T.astype(matmul_dtype)          # (D, Kp), resident across the grid
    b2 = b.reshape(1, Kp)

    if gumbel_noise is None:
        assert key is not None, "key is required when gumbel_noise is None"
        g = jax.random.gumbel(key, (N, Kp), dtype=jnp.float32)
    else:
        g = gumbel_noise.reshape(N, K).astype(jnp.float32)
        if Kp != K:
            g = jnp.pad(g, ((0, 0), (0, Kp - K)))

    in_itemsize = jnp.dtype(matmul_dtype).itemsize
    zq_itemsize = jnp.dtype(zq_dtype).itemsize
    vmem_budget = int(vmem_limit_bytes) if vmem_limit_bytes else _vmem_budget_bytes()
    tm = row_tile or _auto_row_tile(N, D, Kp, in_itemsize, zq_itemsize, vmem_budget)
    assert tm % 128 == 0, "row_tile must be a multiple of 128"
    num_tiles = pl.cdiv(N, tm)              # ragged tail handled by Pallas (no row pad)

    kernel = functools.partial(_gumbel_quant_kernel, kp=Kp)
    cost = pl.CostEstimate(
        flops=2 * N * D * Kp,
        transcendentals=0,
        bytes_accessed=(N * D * in_itemsize + D * Kp * in_itemsize + Kp * 4
                        + N * Kp * 4 + N * Kp * zq_itemsize + N * 4))

    zq_out, codes_out = pl.pallas_call(
        kernel,
        out_shape=(jax.ShapeDtypeStruct((N, Kp), zq_dtype),
                   jax.ShapeDtypeStruct((N, 1), jnp.int32)),
        grid=(num_tiles,),
        in_specs=[
            pl.BlockSpec((tm, D), lambda i: (i, 0)),
            _const_block_spec((D, Kp)),
            _const_block_spec((1, Kp)),
            pl.BlockSpec((tm, Kp), lambda i: (i, 0)),
        ],
        out_specs=[
            pl.BlockSpec((tm, Kp), lambda i: (i, 0)),
            pl.BlockSpec((tm, 1), lambda i: (i, 0)),
        ],
        compiler_params=pltpu.CompilerParams(
            dimension_semantics=("parallel",),
            vmem_limit_bytes=vmem_budget),
        cost_estimate=cost,
    )(z2, w_t, b2, g)

    zq = zq_out[:, :K] if Kp != K else zq_out
    z_q = zq.reshape(B, T, K)
    codes_flat = codes_out[:, 0]
    codes = codes_flat.reshape(B, T)

    # Perplexity from codes (K-bin scatter-add); identical to avg_probs over the
    # hard one-hot for both masked and unmasked paths.
    if mask is None:
        row_w = jnp.ones((N,), jnp.float32)
        denom = jnp.float32(N)
    else:
        row_w = mask.reshape(N).astype(jnp.float32)
        denom = jnp.sum(row_w) + 1e-6
    counts = jnp.zeros((K,), jnp.float32).at[codes_flat].add(row_w)
    avg_probs = counts / denom
    entropy = -jnp.sum(avg_probs * jnp.log(avg_probs + 1e-10))
    perplexity = jnp.exp(entropy)

    loss = jnp.zeros((), jnp.float32)
    # TODO(synk): soft gumbel-softmax probabilities (differentiable / KL part of
    # the straight-through estimator) are not materialized; all five outputs
    # match the PyTorch module's forward values with hard=True.
    return loss, z_q, perplexity, z_q, codes


def _reference_forward(z_e, weight, bias, gumbel_noise):
    """Pure-JAX reference (same noise) for validation of the debug path."""
    B, T, D = z_e.shape
    K = weight.shape[0]
    g = gumbel_noise.reshape(B, T, K)
    scores = jnp.einsum("btd,kd->btk", z_e, weight) + bias + g
    idx = jnp.argmax(scores, axis=-1)
    hard = jax.nn.one_hot(idx, K, dtype=jnp.float32)
    avg = hard.mean(axis=(0, 1))
    perp = jnp.exp(-jnp.sum(avg * jnp.log(avg + 1e-10)))
    return hard, idx, perp


if __name__ == "__main__":
    B, T, D, K = 2, 8, 32, 16   # batch, seq, e_dim, num_latents

    root = jax.random.PRNGKey(0)
    k_x, k_w, k_b, k_g, k_m = jax.random.split(root, 5)

    # Small-integer z / W so the linear projection is exact in both bf16 and f32
    # paths -> the debug comparison below is immune to MXU precision choices.
    z_e = jax.random.randint(k_x, (B, T, D), -2, 3).astype(jnp.float32)
    weight = jax.random.randint(k_w, (K, D), -1, 2).astype(jnp.float32)
    bias = jax.random.normal(k_b, (K,), dtype=jnp.float32) * 0.01

    # --- production path: bf16 MXU, bf16 one-hot output ----------------------
    out = gumbel_quantizer_forward(z_e, weight, bias, k_g, temperature=1.0)
    jax.block_until_ready(out)
    loss, z_q, perplexity, gsm, codes = out

    assert z_q.shape == (B, T, K) and codes.shape == (B, T)
    zq_f = z_q.astype(jnp.float32)
    assert bool(jnp.all((zq_f == 0.0) | (zq_f == 1.0)))           # 0/1 entries
    assert bool(jnp.all(jnp.sum(zq_f, axis=-1) == 1.0))           # one-hot rows
    assert bool(jnp.all(jnp.argmax(zq_f, axis=-1) == codes))      # codes match z_q
    avg = jnp.mean(zq_f, axis=(0, 1))
    perp_ref = jnp.exp(-jnp.sum(avg * jnp.log(avg + 1e-10)))
    assert jnp.allclose(perplexity, perp_ref, rtol=1e-5, atol=1e-5)
    assert float(loss) == 0.0

    # --- debug path: precomputed noise, f32 matmul, vs pure-JAX reference -----
    g_noise = jax.random.gumbel(k_g, (B * T, K), dtype=jnp.float32)
    out_dbg = gumbel_quantizer_forward(z_e, weight, bias, gumbel_noise=g_noise,
                                       matmul_dtype=jnp.float32,
                                       zq_dtype=jnp.float32)
    jax.block_until_ready(out_dbg)
    _, z_q2, perp2, _, codes2 = out_dbg
    ref_hard, ref_idx, ref_perp = _reference_forward(z_e, weight, bias, g_noise)
    assert bool(jnp.all(z_q2 == ref_hard))
    assert bool(jnp.all(codes2 == ref_idx))
    assert jnp.allclose(perp2, ref_perp, rtol=1e-5, atol=1e-5)

    # --- masked-perplexity path -----------------------------------------------
    mask = (jax.random.uniform(k_m, (B, T)) > 0.3).astype(jnp.float32)
    out_m = gumbel_quantizer_forward(z_e, weight, bias, k_g, mask=mask)
    jax.block_until_ready(out_m)
    _, z_qm, perp_m, _, codes_m = out_m
    z_qm_f = z_qm.astype(jnp.float32)
    avg_m = jnp.sum(z_qm_f * mask[..., None], axis=(0, 1)) / (jnp.sum(mask) + 1e-6)
    perp_m_ref = jnp.exp(-jnp.sum(avg_m * jnp.log(avg_m + 1e-10)))
    assert jnp.allclose(perp_m, perp_m_ref, rtol=1e-5, atol=1e-5)

    print("KERNEL_OK")
</pallas_src>

<mosaic_0001>
module attributes {stable_mosaic.version = 11 : i64} {
  func.func @_gumbel_quant_kernel(%arg0: i32, %arg1: memref<128x32xbf16, #tpu.memory_space<vmem>>, %arg2: memref<32x128xbf16, #tpu.memory_space<vmem>>, %arg3: memref<1x128xf32, #tpu.memory_space<vmem>>, %arg4: memref<128x128xf32, #tpu.memory_space<vmem>>, %arg5: memref<128x128xbf16, #tpu.memory_space<vmem>>, %arg6: memref<128x1xi32, #tpu.memory_space<vmem>>) attributes {dimension_semantics = [#tpu.dimension_semantics<parallel>], iteration_bounds = array<i64: 1>, scalar_prefetch = 0 : i64, scratch_operands = 0 : i64, tpu.core_type = #tpu.core_type<tc>, window_params = [{transform_indices = @transform_0, window_bounds = array<i64: 128, 32>}, {pipeline_mode = #tpu.pipeline_mode<synchronous>, transform_indices = @transform_1, window_bounds = array<i64: 32, 128>}, {pipeline_mode = #tpu.pipeline_mode<synchronous>, transform_indices = @transform_2, window_bounds = array<i64: 1, 128>}, {transform_indices = @transform_3, window_bounds = array<i64: 128, 128>}, {transform_indices = @transform_4, window_bounds = array<i64: 128, 128>}, {transform_indices = @transform_5, window_bounds = array<i64: 128, 1>}]} {
    %c0 = arith.constant 0 : index
    %c0_0 = arith.constant 0 : index
    %0 = vector.load %arg1[%c0, %c0_0] : memref<128x32xbf16, #tpu.memory_space<vmem>>, vector<128x32xbf16>
    %c0_1 = arith.constant 0 : index
    %c0_2 = arith.constant 0 : index
    %1 = vector.load %arg2[%c0_1, %c0_2] : memref<32x128xbf16, #tpu.memory_space<vmem>>, vector<32x128xbf16>
    %cst = arith.constant dense<0.000000e+00> : vector<128x128xf32>
    %2 = tpu.matmul %0, %1, %cst {dimension_numbers = #tpu.dot_dimension_numbers<[1], [0], [0], [1], [0, 0, 1, 1], [], []>} : vector<128x32xbf16>, vector<32x128xbf16>, vector<128x128xf32> -> vector<128x128xf32>
    %c0_3 = arith.constant 0 : index
    %c0_4 = arith.constant 0 : index
    %3 = vector.load %arg3[%c0_3, %c0_4] : memref<1x128xf32, #tpu.memory_space<vmem>>, vector<1x128xf32>
    %4 = vector.broadcast %3 : vector<1x128xf32> to vector<128x128xf32>
    %5 = arith.addf %2, %4 : vector<128x128xf32>
    %c0_5 = arith.constant 0 : index
    %c0_6 = arith.constant 0 : index
    %6 = vector.load %arg4[%c0_5, %c0_6] : memref<128x128xf32, #tpu.memory_space<vmem>>, vector<128x128xf32>
    %7 = arith.addf %5, %6 : vector<128x128xf32>
    %8 = tpu.iota {dimensions = array<i32: 1>} : vector<128x128xi32>
    %cst_7 = arith.constant dense<0xFF800000> : vector<128xf32>
    %9 = vector.multi_reduction <maximumf>, %7, %cst_7 [1] : vector<128x128xf32> to vector<128xf32>
    %10 = vector.shape_cast %9 : vector<128xf32> to vector<128x1xf32>
    %11 = vector.broadcast %10 : vector<128x1xf32> to vector<128x128xf32>
    %12 = arith.cmpf oge, %7, %11 : vector<128x128xf32>
    %c128_i32 = arith.constant 128 : i32
    %13 = vector.broadcast %c128_i32 : i32 to vector<128x128xi32>
    %14 = arith.select %12, %8, %13 : vector<128x128xi1>, vector<128x128xi32>
    %cst_8 = arith.constant dense<2147483647> : vector<128xi32>
    %15 = vector.multi_reduction <minsi>, %14, %cst_8 [1] : vector<128x128xi32> to vector<128xi32>
    %16 = vector.shape_cast %15 : vector<128xi32> to vector<128x1xi32>
    %17 = vector.broadcast %16 : vector<128x1xi32> to vector<128x128xi32>
    %18 = arith.cmpi eq, %8, %17 : vector<128x128xi32>
    %19 = arith.extui %18 : vector<128x128xi1> to vector<128x128xi32>
    %20 = arith.sitofp %19 : vector<128x128xi32> to vector<128x128xf32>
    %21 = arith.truncf %20 : vector<128x128xf32> to vector<128x128xbf16>
    %c0_9 = arith.constant 0 : index
    %c0_10 = arith.constant 0 : index
    %22 = vector.load %arg5[%c0_9, %c0_10] : memref<128x128xbf16, #tpu.memory_space<vmem>>, vector<128x128xbf16>
    tpu.vector_store %arg5[%c0_9, %c0_10], %21 {strides = array<i32>} : memref<128x128xbf16, #tpu.memory_space<vmem>>, vector<128x128xbf16>,
    %c0_11 = arith.constant 0 : index
    %c0_12 = arith.constant 0 : index
    %23 = vector.load %arg6[%c0_11, %c0_12] : memref<128x1xi32, #tpu.memory_space<vmem>>, vector<128x1xi32>
    tpu.vector_store %arg6[%c0_11, %c0_12], %16 {strides = array<i32>} : memref<128x1xi32, #tpu.memory_space<vmem>>, vector<128x1xi32>,
    return
  }
  func.func @transform_0(%arg0: i32) -> (i32, i32) {
    %c0_i32 = arith.constant 0 : i32
    %c0_i32_0 = arith.constant 0 : i32
    return %arg0, %c0_i32 : i32, i32
  }
  func.func @transform_1(%arg0: i32) -> (i32, i32) {
    %c0_i32 = arith.constant 0 : i32
    %c0_i32_0 = arith.constant 0 : i32
    %c0_i32_1 = arith.constant 0 : i32
    return %c0_i32, %c0_i32_0 : i32, i32
  }
  func.func @transform_2(%arg0: i32) -> (i32, i32) {
    %c0_i32 = arith.constant 0 : i32
    %c0_i32_0 = arith.constant 0 : i32
    %c0_i32_1 = arith.constant 0 : i32
    return %c0_i32, %c0_i32_0 : i32, i32
  }
  func.func @transform_3(%arg0: i32) -> (i32, i32) {
    %c0_i32 = arith.constant 0 : i32
    %c0_i32_0 = arith.constant 0 : i32
    return %arg0, %c0_i32 : i32, i32
  }
  func.func @transform_4(%arg0: i32) -> (i32, i32) {
    %c0_i32 = arith.constant 0 : i32
    %c0_i32_0 = arith.constant 0 : i32
    return %arg0, %c0_i32 : i32, i32
  }
  func.func @transform_5(%arg0: i32) -> (i32, i32) {
    %c0_i32 = arith.constant 0 : i32
    %c0_i32_0 = arith.constant 0 : i32
    return %arg0, %c0_i32 : i32, i32
  }
}

</mosaic_0001>

<llo_original>
// kernel: tpu_custom_call.1
$region0: #{tpu_custom_call.1}
  #allocation0 [shape = 'u32[]', space=smem, size = 0x4, offset = 0x4, fixed_abs, tag = 'smem constant byte address 0x4 - core index']
  #allocation1 [shape = 'u32[144,128]{1,0:T(1,128)}', space=vmem, size = 0x12000, scoped, tag = 'internal scratch']
  %s0 = inlined_call_operand.hbm [shape: bf16[16,32], index: 0, kind: input, shape index: {}]
  %s1 = inlined_call_operand.hbm [shape: bf16[32,128], index: 1, kind: input, shape index: {}]
  %s2 = inlined_call_operand.hbm [shape: f32[1,128], index: 2, kind: input, shape index: {}]
  %s3 = inlined_call_operand.hbm [shape: f32[16,128], index: 3, kind: input, shape index: {}]
  %s4 = inlined_call_operand.hbm [shape: bf16[16,128], index: 4, kind: output, shape index: {0}]
  %s5 = inlined_call_operand.hbm [shape: s32[16,1], index: 5, kind: output, shape index: {1}]
  %6 = xla_tuple %s4, %s5
  %s7 = sld [smem:[#allocation0]]
  $region50: #{tpu_custom_call.1} parent=0
    _
  %s9 = ssub.s32 1, %s7
  %s10 = scalar_select 0, %s9, %s7
  $region1: #{tpu_custom_call.1} parent=0
    #allocation2 [shape = 'u8[32768]{0}', space=vmem, size = 0x8000, scoped, tag = 'input window, operand 0, single buffered']
    #allocation3 [shape = 's32[1]{0}', space=sflag, size = 0x4, scoped, tag = 'scoped memory for tpu_custom_call.1']
    #allocation4 [shape = 's32[1]{0}', space=sflag, size = 0x4, scoped, tag = 'scoped memory for tpu_custom_call.1']
    #allocation5 [shape = 'u8[8192]{0}', space=vmem, size = 0x2000, scoped, tag = 'input window, operand 1, single buffered']
    #allocation6 [shape = 's32[1]{0}', space=sflag, size = 0x4, scoped, tag = 'scoped memory for tpu_custom_call.1']
    #allocation7 [shape = 'u8[512]{0}', space=vmem, size = 0x400, scoped, tag = 'input window, operand 2, single buffered']
    #allocation8 [shape = 'u8[65536]{0}', space=vmem, size = 0x10000, scoped, tag = 'input window, operand 3, single buffered']
    #allocation9 [shape = 's32[1]{0}', space=sflag, size = 0x4, scoped, tag = 'scoped memory for tpu_custom_call.1']
    #allocation10 [shape = 'u8[32768]{0}', space=vmem, size = 0x8000, scoped, tag = 'output window, operand 0, single buffered']
    #allocation11 [shape = 'u8[65536]{0}', space=vmem, size = 0x10000, scoped, tag = 'output window, operand 1, single buffered']
    #allocation12 [shape = 's32[1]{0}', space=sflag, size = 0x4, scoped, tag = 'scoped memory for tpu_custom_call.1']
    %11 = vsyncpa [#allocation3], 0
    %12 = vsyncpa [#allocation6], 0
    %13 = vsyncpa [#allocation9], 0
    %14 = vsyncpa [#allocation4], 0
    %15 = vsyncpa [#allocation12], 0
    // Predicated region
    $region2: #{tpu_custom_call.1} parent=1 // pred_check
      _
    $region3: #{tpu_custom_call.1} parent=1 // pred_check_branch
      %17 = sbr.rel (0) target = $region5
    $region4: #{tpu_custom_call.1} parent=1 // pred_region
      %s19 = ssub.s32 1024, 128
      %20 = vsyncadd [#allocation3], %s19
      %s21 = sshll.u32 [#allocation2], 4
      %s22 = int_to_ptr.vmem [resolvable:$true] %s21
      %27 = dma.hbm_to_vmem [thread:$0]  %s0, 128, %s22, [#allocation3], 64, 64, 4
    $region5: #{tpu_custom_call.1} parent=1 // pred_fallthru
      _
    // Predicated region
    $region6: #{tpu_custom_call.1} parent=1 // pred_check
      _
    $region7: #{tpu_custom_call.1} parent=1 // pred_check_branch
      %29 = sbr.rel (0) target = $region9
    $region8: #{tpu_custom_call.1} parent=1 // pred_region
      %s31 = ssub.s32 256, 256
      %32 = vsyncadd [#allocation6], %s31
      %s33 = sshll.u32 [#allocation5], 4
      %s34 = int_to_ptr.vmem [resolvable:$true] %s33
      %39 = dma.hbm_to_vmem [thread:$0]  %s1, 256, %s34, [#allocation6], 64, 64, 4
    $region9: #{tpu_custom_call.1} parent=1 // pred_fallthru
      _
    // Predicated region
    $region10: #{tpu_custom_call.1} parent=1 // pred_check
      _
    $region11: #{tpu_custom_call.1} parent=1 // pred_check_branch
      %41 = sbr.rel (0) target = $region13
    $region12: #{tpu_custom_call.1} parent=1 // pred_region
      %s43 = ssub.s32 16, 16
      %44 = vsyncadd [#allocation6], %s43
      %s46 = sshll.u32 [#allocation7], 4
      %s47 = int_to_ptr.vmem [resolvable:$true] %s46
      %49 = dma.hbm_to_vmem [thread:$0]  %s2, 16, %s47, [#allocation6]
    $region13: #{tpu_custom_call.1} parent=1 // pred_fallthru
      _
    // Predicated region
    $region14: #{tpu_custom_call.1} parent=1 // pred_check
      _
    $region15: #{tpu_custom_call.1} parent=1 // pred_check_branch
      %51 = sbr.rel (0) target = $region17
    $region16: #{tpu_custom_call.1} parent=1 // pred_region
      %s53 = ssub.s32 2048, 256
      %54 = vsyncadd [#allocation9], %s53
      %s55 = sshll.u32 [#allocation8], 4
      %s56 = int_to_ptr.vmem [resolvable:$true] %s55
      %61 = dma.hbm_to_vmem [thread:$0]  %s3, 256, %s56, [#allocation9], 128, 128, 8
    $region17: #{tpu_custom_call.1} parent=1 // pred_fallthru
      _
    // Predicated region
    $region18: #{tpu_custom_call.1} parent=1 // pred_check
      _
    $region19: #{tpu_custom_call.1} parent=1 // pred_check_branch
      %63 = sbr.rel (0) target = $region21
    $region20: #{tpu_custom_call.1} parent=1 // pred_region
      %64 = dma.done [#allocation3], 1024
    $region21: #{tpu_custom_call.1} parent=1 // pred_fallthru
      _
    // Predicated region
    $region22: #{tpu_custom_call.1} parent=1 // pred_check
      _
    $region23: #{tpu_custom_call.1} parent=1 // pred_check_branch
      %66 = sbr.rel (0) target = $region25
    $region24: #{tpu_custom_call.1} parent=1 // pred_region
      %67 = dma.done [#allocation6], 256
    $region25: #{tpu_custom_call.1} parent=1 // pred_fallthru
      _
    // Predicated region
    $region26: #{tpu_custom_call.1} parent=1 // pred_check
      _
    $region27: #{tpu_custom_call.1} parent=1 // pred_check_branch
      %69 = sbr.rel (0) target = $region29
    $region28: #{tpu_custom_call.1} parent=1 // pred_region
      %70 = dma.done [#allocation6], 16
    $region29: #{tpu_custom_call.1} parent=1 // pred_fallthru
      _
    // Predicated region
    $region30: #{tpu_custom_call.1} parent=1 // pred_check
      _
    $region31: #{tpu_custom_call.1} parent=1 // pred_check_branch
      %72 = sbr.rel (0) target = $region33
    $region32: #{tpu_custom_call.1} parent=1 // pred_region
      %73 = dma.done [#allocation9], 2048
    $region33: #{tpu_custom_call.1} parent=1 // pred_fallthru
      _
    %v75 = vld [vmem:[#allocation2] sm:$0xf]
    %v76 = vld [vmem:[#allocation2 + $0x4] sm:$0xf]
    %v77 = vld [vmem:[#allocation2 + $0x8] sm:$0xf]
    %v78 = vld [vmem:[#allocation2 + $0xc] sm:$0xf]
    %v79 = vld [vmem:[#allocation2 + $0x10] sm:$0xf]
    %v80 = vld [vmem:[#allocation2 + $0x14] sm:$0xf]
    %v81 = vld [vmem:[#allocation2 + $0x18] sm:$0xf]
    %v82 = vld [vmem:[#allocation2 + $0x1c] sm:$0xf]
    %v83 = vld [vmem:[#allocation2 + $0x20] sm:$0xf]
    %v84 = vld [vmem:[#allocation2 + $0x24] sm:$0xf]
    %v85 = vld [vmem:[#allocation2 + $0x28] sm:$0xf]
    %v86 = vld [vmem:[#allocation2 + $0x2c] sm:$0xf]
    %v87 = vld [vmem:[#allocation2 + $0x30] sm:$0xf]
    %v88 = vld [vmem:[#allocation2 + $0x34] sm:$0xf]
    %v89 = vld [vmem:[#allocation2 + $0x38] sm:$0xf]
    %v90 = vld [vmem:[#allocation2 + $0x3c] sm:$0xf]
    %v91 = vld [vmem:[#allocation5] sm:$0xf]
    %v92 = vld [vmem:[#allocation5 + $0x4] sm:$0xf]
    %v93 = vld [vmem:[#allocation5 + $0x8] sm:$0xf]
    %v94 = vld [vmem:[#allocation5 + $0xc] sm:$0xf]
    %v95 = vld [vmem:[#allocation7] sm:$0x1]
    %v97 = vlaneseq
    %v98 = vshrl.u32 %v97, 7
    %v99 = vsub.s32 0, %v98
    %v100 = vrot.slane %v95, %v99
    %v118 = vunpack.c.l.b16 %v75
    %v119 = vunpack.c.l.b16 %v76
    %v120 = vunpack.c.l.b16 %v77
    %v121 = vunpack.c.l.b16 %v78
    %v122 = vunpack.c.l.b16 %v79
    %v123 = vunpack.c.l.b16 %v80
    %v124 = vunpack.c.l.b16 %v81
    %v125 = vunpack.c.l.b16 %v82
    %v126 = vunpack.c.l.b16 %v83
    %v127 = vunpack.c.l.b16 %v84
    %v128 = vunpack.c.l.b16 %v85
    %v129 = vunpack.c.l.b16 %v86
    %v130 = vunpack.c.l.b16 %v87
    %v131 = vunpack.c.l.b16 %v88
    %v132 = vunpack.c.l.b16 %v89
    %v133 = vunpack.c.l.b16 %v90
    %v134 = vpack.c.b16 %v119, %v118
    %v135 = vpack.c.b16 %v121, %v120
    %v136 = vpack.c.b16 %v123, %v122
    %v137 = vpack.c.b16 %v125, %v124
    %v138 = vpack.c.b16 %v127, %v126
    %v139 = vpack.c.b16 %v129, %v128
    %v140 = vpack.c.b16 %v131, %v130
    %v141 = vpack.c.b16 %v133, %v132
    %v146 = vunpack.c.l.b16 %v91
    %v147 = vunpack.c.l.b16 %v92
    %v148 = vunpack.c.l.b16 %v93
    %v149 = vunpack.c.l.b16 %v94
    %v150 = vpack.c.b16 %v147, %v146
    %v151 = vpack.c.b16 %v149, %v148
    %vm154 = vcmask 261120
    %v156 = vsel %vm154, %v134, 0
    %v159 = vsel %vm154, %v135, 0
    %v162 = vsel %vm154, %v136, 0
    %v165 = vsel %vm154, %v137, 0
    %v168 = vsel %vm154, %v138, 0
    %v171 = vsel %vm154, %v139, 0
    %v174 = vsel %vm154, %v140, 0
    %v177 = vsel %vm154, %v141, 0
    %179 = vmatprep.subr.bf16.mxu0 0
    %180 = vmatpush1.bf16.msra.mxu0 %v150
    %181 = vmatprep.subr.bf16.mxu0 0
    %182 = vmatpush1.bf16.msra.mxu0 %v151
    %183 = vmatprep.subr.bf16.mxu0 0
    %184 = vmatpush1.bf16.msra.mxu0 0
    %185 = vmatprep.subr.bf16.mxu0 0
    %186 = vmatpush1.bf16.msra.mxu0 0
    %187 = vmatprep.subr.bf16.mxu0 0
    %188 = vmatpush1.bf16.msra.mxu0 0
    %189 = vmatprep.subr.bf16.mxu0 0
    %190 = vmatpush1.bf16.msra.mxu0 0
    %191 = vmatprep.subr.bf16.mxu0 0
    %192 = vmatpush1.bf16.msra.mxu0 0
    %193 = vmatprep.subr.bf16.mxu0 0
    %194 = vmatpush1.bf16.msra.mxu0 0
    %195 = vmatprep.subr.bf16.mxu0 0
    %196 = vmatpush1.bf16.msra.mxu0 0
    %197 = vmatprep.subr.bf16.mxu0 0
    %198 = vmatpush1.bf16.msra.mxu0 0
    %199 = vmatprep.subr.bf16.mxu0 0
    %200 = vmatpush1.bf16.msra.mxu0 0
    %201 = vmatprep.subr.bf16.mxu0 0
    %202 = vmatpush1.bf16.msra.mxu0 0
    %203 = vmatprep.subr.bf16.mxu0 0
    %204 = vmatpush1.bf16.msra.mxu0 0
    %205 = vmatprep.subr.bf16.mxu0 0
    %206 = vmatpush1.bf16.msra.mxu0 0
    %207 = vmatprep.subr.bf16.mxu0 0
    %208 = vmatpush1.bf16.msra.mxu0 0
    %209 = vmatprep.subr.bf16.mxu0 0
    %210 = vmatpush1.bf16.msra.mxu0 0
    %211 = vmatprep.mubr.bf16.mxu0 0
    %212 = vmatmul.mubr.bf16.gmra.mrb[0].mxu0 %v156
    %v213 = vpop.f32.mrb[0].mxu0
    %v214 = vadd.f32 %v100, %v213
    %v215 = vpop.f32.mrb[0].mxu0
    %v216 = vpop.f32.mrb[0].mxu0
    %v217 = vadd.f32 %v100, %v216
    %v218 = vpop.f32.mrb[0].mxu0
    %219 = vmatprep.mubr.bf16.mxu0 0
    %220 = vmatmul.mubr.bf16.gmra.mrb[0].mxu0 %v159
    %v221 = vpop.f32.mrb[0].mxu0
    %v222 = vadd.f32 %v100, %v221
    %v223 = vpop.f32.mrb[0].mxu0
    %v224 = vpop.f32.mrb[0].mxu0
    %v225 = vadd.f32 %v100, %v224
    %v226 = vpop.f32.mrb[0].mxu0
    %227 = vmatprep.mubr.bf16.mxu0 0
    %228 = vmatmul.mubr.bf16.gmra.mrb[0].mxu0 %v162
    %v229 = vpop.f32.mrb[0].mxu0
    %v230 = vadd.f32 %v100, %v229
    %v231 = vpop.f32.mrb[0].mxu0
    %v232 = vpop.f32.mrb[0].mxu0
    %v233 = vadd.f32 %v100, %v232
    %v234 = vpop.f32.mrb[0].mxu0
    %235 = vmatprep.mubr.bf16.mxu0 0
    %236 = vmatmul.mubr.bf16.gmra.mrb[0].mxu0 %v165
    %v237 = vpop.f32.mrb[0].mxu0
    %v238 = vadd.f32 %v100, %v237
    %v239 = vpop.f32.mrb[0].mxu0
    %v240 = vpop.f32.mrb[0].mxu0
    %v241 = vadd.f32 %v100, %v240
    %v242 = vpop.f32.mrb[0].mxu0
    %243 = vmatprep.mubr.bf16.mxu0 0
    %244 = vmatmul.mubr.bf16.gmra.mrb[0].mxu0 %v168
    %v245 = vpop.f32.mrb[0].mxu0
    %v246 = vadd.f32 %v100, %v245
    %v247 = vpop.f32.mrb[0].mxu0
    %v248 = vpop.f32.mrb[0].mxu0
    %v249 = vadd.f32 %v100, %v248
    %v250 = vpop.f32.mrb[0].mxu0
    %251 = vmatprep.mubr.bf16.mxu0 0
    %252 = vmatmul.mubr.bf16.gmra.mrb[0].mxu0 %v171
    %v253 = vpop.f32.mrb[0].mxu0
    %v254 = vadd.f32 %v100, %v253
    %v255 = vpop.f32.mrb[0].mxu0
    %v256 = vpop.f32.mrb[0].mxu0
    %v257 = vadd.f32 %v100, %v256
    %v258 = vpop.f32.mrb[0].mxu0
    %259 = vmatprep.mubr.bf16.mxu0 0
    %260 = vmatmul.mubr.bf16.gmra.mrb[0].mxu0 %v174
    %v261 = vpop.f32.mrb[0].mxu0
    %v262 = vadd.f32 %v100, %v261
    %v263 = vpop.f32.mrb[0].mxu0
    %v264 = vpop.f32.mrb[0].mxu0
    %v265 = vadd.f32 %v100, %v264
    %v266 = vpop.f32.mrb[0].mxu0
    %267 = vmatprep.mubr.bf16.mxu0 0
    %268 = vmatmul.mubr.bf16.gmra.mrb[0].mxu0 %v177
    %v269 = vpop.f32.mrb[0].mxu0
    %v270 = vadd.f32 %v100, %v269
    %v271 = vpop.f32.mrb[0].mxu0
    %v272 = vpop.f32.mrb[0].mxu0
    %v273 = vadd.f32 %v100, %v272
    %v274 = vpop.f32.mrb[0].mxu0
    %275 = vdwg.mxu0
    %v276 = vld [vmem:[#allocation8] sm:$0xff]
    %v277 = vld [vmem:[#allocation8 + $0x8] sm:$0xff]
    %v278 = vld [vmem:[#allocation8 + $0x10] sm:$0xff]
    %v279 = vld [vmem:[#allocation8 + $0x18] sm:$0xff]
    %v280 = vld [vmem:[#allocation8 + $0x20] sm:$0xff]
    %v281 = vld [vmem:[#allocation8 + $0x28] sm:$0xff]
    %v282 = vld [vmem:[#allocation8 + $0x30] sm:$0xff]
    %v283 = vld [vmem:[#allocation8 + $0x38] sm:$0xff]
    %v284 = vld [vmem:[#allocation8 + $0x40] sm:$0xff]
    %v285 = vld [vmem:[#allocation8 + $0x48] sm:$0xff]
    %v286 = vld [vmem:[#allocation8 + $0x50] sm:$0xff]
    %v287 = vld [vmem:[#allocation8 + $0x58] sm:$0xff]
    %v288 = vld [vmem:[#allocation8 + $0x60] sm:$0xff]
    %v289 = vld [vmem:[#allocation8 + $0x68] sm:$0xff]
    %v290 = vld [vmem:[#allocation8 + $0x70] sm:$0xff]
    %v291 = vld [vmem:[#allocation8 + $0x78] sm:$0xff]
    %v292 = vadd.f32 %v214, %v276
    %v293 = vadd.f32 %v217, %v277
    %v294 = vadd.f32 %v222, %v278
    %v295 = vadd.f32 %v225, %v279
    %v296 = vadd.f32 %v230, %v280
    %v297 = vadd.f32 %v233, %v281
    %v298 = vadd.f32 %v238, %v282
    %v299 = vadd.f32 %v241, %v283
    %v300 = vadd.f32 %v246, %v284
    %v301 = vadd.f32 %v249, %v285
    %v302 = vadd.f32 %v254, %v286
    %v303 = vadd.f32 %v257, %v287
    %v304 = vadd.f32 %v262, %v288
    %v305 = vadd.f32 %v265, %v289
    %v306 = vadd.f32 %v270, %v290
    %v307 = vadd.f32 %v273, %v291
    %v308 = vlaneseq
    %v309 = vand.u32 %v308, 127
    %310 = vmax.xlane.f32.xlu0 %v292
    %v311 = vpop.xlane.xlu0 %310
    %312 = vmax.xlane.f32.xlu0 %v293
    %v313 = vpop.xlane.xlu0 %312
    %314 = vmax.xlane.f32.xlu0 %v294
    %v315 = vpop.xlane.xlu0 %314
    %316 = vmax.xlane.f32.xlu0 %v295
    %v317 = vpop.xlane.xlu0 %316
    %318 = vmax.xlane.f32.xlu0 %v296
    %v319 = vpop.xlane.xlu0 %318
    %320 = vmax.xlane.f32.xlu0 %v297
    %v321 = vpop.xlane.xlu0 %320
    %322 = vmax.xlane.f32.xlu0 %v298
    %v323 = vpop.xlane.xlu0 %322
    %324 = vmax.xlane.f32.xlu0 %v299
    %v325 = vpop.xlane.xlu0 %324
    %326 = vmax.xlane.f32.xlu0 %v300
    %v327 = vpop.xlane.xlu0 %326
    %328 = vmax.xlane.f32.xlu0 %v301
    %v329 = vpop.xlane.xlu0 %328
    %330 = vmax.xlane.f32.xlu0 %v302
    %v331 = vpop.xlane.xlu0 %330
    %332 = vmax.xlane.f32.xlu0 %v303
    %v333 = vpop.xlane.xlu0 %332
    %334 = vmax.xlane.f32.xlu0 %v304
    %v335 = vpop.xlane.xlu0 %334
    %336 = vmax.xlane.f32.xlu0 %v305
    %v337 = vpop.xlane.xlu0 %336
    %338 = vmax.xlane.f32.xlu0 %v306
    %v339 = vpop.xlane.xlu0 %338
    %340 = vmax.xlane.f32.xlu0 %v307
    %v341 = vpop.xlane.xlu0 %340
    %vm342 = vcmp.ge.f32.partialorder %v292, %v311
    %vm343 = vcmp.ge.f32.partialorder %v293, %v313
    %vm344 = vcmp.ge.f32.partialorder %v294, %v315
    %vm345 = vcmp.ge.f32.partialorder %v295, %v317
    %vm346 = vcmp.ge.f32.partialorder %v296, %v319
    %vm347 = vcmp.ge.f32.partialorder %v297, %v321
    %vm348 = vcmp.ge.f32.partialorder %v298, %v323
    %vm349 = vcmp.ge.f32.partialorder %v299, %v325
    %vm350 = vcmp.ge.f32.partialorder %v300, %v327
    %vm351 = vcmp.ge.f32.partialorder %v301, %v329
    %vm352 = vcmp.ge.f32.partialorder %v302, %v331
    %vm353 = vcmp.ge.f32.partialorder %v303, %v333
    %vm354 = vcmp.ge.f32.partialorder %v304, %v335
    %vm355 = vcmp.ge.f32.partialorder %v305, %v337
    %vm356 = vcmp.ge.f32.partialorder %v306, %v339
    %vm357 = vcmp.ge.f32.partialorder %v307, %v341
    %v358 = vsel %vm342, %v309, 128
    %v359 = vsel %vm343, %v309, 128
    %v360 = vsel %vm344, %v309, 128
    %v361 = vsel %vm345, %v309, 128
    %v362 = vsel %vm346, %v309, 128
    %v363 = vsel %vm347, %v309, 128
    %v364 = vsel %vm348, %v309, 128
    %v365 = vsel %vm349, %v309, 128
    %v366 = vsel %vm350, %v309, 128
    %v367 = vsel %vm351, %v309, 128
    %v368 = vsel %vm352, %v309, 128
    %v369 = vsel %vm353, %v309, 128
    %v370 = vsel %vm354, %v309, 128
    %v371 = vsel %vm355, %v309, 128
    %v372 = vsel %vm356, %v309, 128
    %v373 = vsel %vm357, %v309, 128
    %v374 = vand.u32 %v358, 65535
    %v375 = vshra.s32 %v358, 16
    %v376 = vcvt.s32.f32 %v374
    %v377 = vcvt.s32.f32 %v375
    %378 = vmin.xlane.f32.xlu0 %v377
    %v379 = vpop.xlane.xlu0 %378
    %vm380 = vcmp.eq.f32.partialorder %v377, %v379
    %v381 = vsel %vm380, %v376, inf
    %382 = vmin.xlane.f32.xlu0 %v381
    %v383 = vpop.xlane.xlu0 %382
    %v384 = vcvt.f32.s32 %v383
    %v385 = vcvt.f32.s32 %v379
    %v386 = vshll.u32 %v385, 16
    %v387 = vadd.s32 %v386, %v384
    %v388 = vand.u32 %v359, 65535
    %v389 = vshra.s32 %v359, 16
    %v390 = vcvt.s32.f32 %v388
    %v391 = vcvt.s32.f32 %v389
    %392 = vmin.xlane.f32.xlu0 %v391
    %v393 = vpop.xlane.xlu0 %392
    %vm394 = vcmp.eq.f32.partialorder %v391, %v393
    %v395 = vsel %vm394, %v390, inf
    %396 = vmin.xlane.f32.xlu0 %v395
    %v397 = vpop.xlane.xlu0 %396
    %v398 = vcvt.f32.s32 %v397
    %v399 = vcvt.f32.s32 %v393
    %v400 = vshll.u32 %v399, 16
    %v401 = vadd.s32 %v400, %v398
    %v402 = vand.u32 %v360, 65535
    %v403 = vshra.s32 %v360, 16
    %v404 = vcvt.s32.f32 %v402
    %v405 = vcvt.s32.f32 %v403
    %406 = vmin.xlane.f32.xlu0 %v405
    %v407 = vpop.xlane.xlu0 %406
    %vm408 = vcmp.eq.f32.partialorder %v405, %v407
    %v409 = vsel %vm408, %v404, inf
    %410 = vmin.xlane.f32.xlu0 %v409
    %v411 = vpop.xlane.xlu0 %410
    %v412 = vcvt.f32.s32 %v411
    %v413 = vcvt.f32.s32 %v407
    %v414 = vshll.u32 %v413, 16
    %v415 = vadd.s32 %v414, %v412
    %v416 = vand.u32 %v361, 65535
    %v417 = vshra.s32 %v361, 16
    %v418 = vcvt.s32.f32 %v416
    %v419 = vcvt.s32.f32 %v417
    %420 = vmin.xlane.f32.xlu0 %v419
    %v421 = vpop.xlane.xlu0 %420
    %vm422 = vcmp.eq.f32.partialorder %v419, %v421
    %v423 = vsel %vm422, %v418, inf
    %424 = vmin.xlane.f32.xlu0 %v423
    %v425 = vpop.xlane.xlu0 %424
    %v426 = vcvt.f32.s32 %v425
    %v427 = vcvt.f32.s32 %v421
    %v428 = vshll.u32 %v427, 16
    %v429 = vadd.s32 %v428, %v426
    %v430 = vand.u32 %v362, 65535
    %v431 = vshra.s32 %v362, 16
    %v432 = vcvt.s32.f32 %v430
    %v433 = vcvt.s32.f32 %v431
    %434 = vmin.xlane.f32.xlu0 %v433
    %v435 = vpop.xlane.xlu0 %434
    %vm436 = vcmp.eq.f32.partialorder %v433, %v435
    %v437 = vsel %vm436, %v432, inf
    %438 = vmin.xlane.f32.xlu0 %v437
    %v439 = vpop.xlane.xlu0 %438
    %v440 = vcvt.f32.s32 %v439
    %v441 = vcvt.f32.s32 %v435
    %v442 = vshll.u32 %v441, 16
    %v443 = vadd.s32 %v442, %v440
    %v444 = vand.u32 %v363, 65535
    %v445 = vshra.s32 %v363, 16
    %v446 = vcvt.s32.f32 %v444
    %v447 = vcvt.s32.f32 %v445
    %448 = vmin.xlane.f32.xlu0 %v447
    %v449 = vpop.xlane.xlu0 %448
    %vm450 = vcmp.eq.f32.partialorder %v447, %v449
    %v451 = vsel %vm450, %v446, inf
    %452 = vmin.xlane.f32.xlu0 %v451
    %v453 = vpop.xlane.xlu0 %452
    %v454 = vcvt.f32.s32 %v453
    %v455 = vcvt.f32.s32 %v449
    %v456 = vshll.u32 %v455, 16
    %v457 = vadd.s32 %v456, %v454
    %v458 = vand.u32 %v364, 65535
    %v459 = vshra.s32 %v364, 16
    %v460 = vcvt.s32.f32 %v458
    %v461 = vcvt.s32.f32 %v459
    %462 = vmin.xlane.f32.xlu0 %v461
    %v463 = vpop.xlane.xlu0 %462
    %vm464 = vcmp.eq.f32.partialorder %v461, %v463
    %v465 = vsel %vm464, %v460, inf
    %466 = vmin.xlane.f32.xlu0 %v465
    %v467 = vpop.xlane.xlu0 %466
    %v468 = vcvt.f32.s32 %v467
    %v469 = vcvt.f32.s32 %v463
    %v470 = vshll.u32 %v469, 16
    %v471 = vadd.s32 %v470, %v468
    %v472 = vand.u32 %v365, 65535
    %v473 = vshra.s32 %v365, 16
    %v474 = vcvt.s32.f32 %v472
    %v475 = vcvt.s32.f32 %v473
    %476 = vmin.xlane.f32.xlu0 %v475
    %v477 = vpop.xlane.xlu0 %476
    %vm478 = vcmp.eq.f32.partialorder %v475, %v477
    %v479 = vsel %vm478, %v474, inf
    %480 = vmin.xlane.f32.xlu0 %v479
    %v481 = vpop.xlane.xlu0 %480
    %v482 = vcvt.f32.s32 %v481
    %v483 = vcvt.f32.s32 %v477
    %v484 = vshll.u32 %v483, 16
    %v485 = vadd.s32 %v484, %v482
    %v486 = vand.u32 %v366, 65535
    %v487 = vshra.s32 %v366, 16
    %v488 = vcvt.s32.f32 %v486
    %v489 = vcvt.s32.f32 %v487
    %490 = vmin.xlane.f32.xlu0 %v489
    %v491 = vpop.xlane.xlu0 %490
    %vm492 = vcmp.eq.f32.partialorder %v489, %v491
    %v493 = vsel %vm492, %v488, inf
    %494 = vmin.xlane.f32.xlu0 %v493
    %v495 = vpop.xlane.xlu0 %494
    %v496 = vcvt.f32.s32 %v495
    %v497 = vcvt.f32.s32 %v491
    %v498 = vshll.u32 %v497, 16
    %v499 = vadd.s32 %v498, %v496
    %v500 = vand.u32 %v367, 65535
    %v501 = vshra.s32 %v367, 16
    %v502 = vcvt.s32.f32 %v500
    %v503 = vcvt.s32.f32 %v501
    %504 = vmin.xlane.f32.xlu0 %v503
    %v505 = vpop.xlane.xlu0 %504
    %vm506 = vcmp.eq.f32.partialorder %v503, %v505
    %v507 = vsel %vm506, %v502, inf
    %508 = vmin.xlane.f32.xlu0 %v507
    %v509 = vpop.xlane.xlu0 %508
    %v510 = vcvt.f32.s32 %v509
    %v511 = vcvt.f32.s32 %v505
    %v512 = vshll.u32 %v511, 16
    %v513 = vadd.s32 %v512, %v510
    %v514 = vand.u32 %v368, 65535
    %v515 = vshra.s32 %v368, 16
    %v516 = vcvt.s32.f32 %v514
    %v517 = vcvt.s32.f32 %v515
    %518 = vmin.xlane.f32.xlu0 %v517
    %v519 = vpop.xlane.xlu0 %518
    %vm520 = vcmp.eq.f32.partialorder %v517, %v519
    %v521 = vsel %vm520, %v516, inf
    %522 = vmin.xlane.f32.xlu0 %v521
    %v523 = vpop.xlane.xlu0 %522
    %v524 = vcvt.f32.s32 %v523
    %v525 = vcvt.f32.s32 %v519
    %v526 = vshll.u32 %v525, 16
    %v527 = vadd.s32 %v526, %v524
    %v528 = vand.u32 %v369, 65535
    %v529 = vshra.s32 %v369, 16
    %v530 = vcvt.s32.f32 %v528
    %v531 = vcvt.s32.f32 %v529
    %532 = vmin.xlane.f32.xlu0 %v531
    %v533 = vpop.xlane.xlu0 %532
    %vm534 = vcmp.eq.f32.partialorder %v531, %v533
    %v535 = vsel %vm534, %v530, inf
    %536 = vmin.xlane.f32.xlu0 %v535
    %v537 = vpop.xlane.xlu0 %536
    %v538 = vcvt.f32.s32 %v537
    %v539 = vcvt.f32.s32 %v533
    %v540 = vshll.u32 %v539, 16
    %v541 = vadd.s32 %v540, %v538
    %v542 = vand.u32 %v370, 65535
    %v543 = vshra.s32 %v370, 16
    %v544 = vcvt.s32.f32 %v542
    %v545 = vcvt.s32.f32 %v543
    %546 = vmin.xlane.f32.xlu0 %v545
    %v547 = vpop.xlane.xlu0 %546
    %vm548 = vcmp.eq.f32.partialorder %v545, %v547
    %v549 = vsel %vm548, %v544, inf
    %550 = vmin.xlane.f32.xlu0 %v549
    %v551 = vpop.xlane.xlu0 %550
    %v552 = vcvt.f32.s32 %v551
    %v553 = vcvt.f32.s32 %v547
    %v554 = vshll.u32 %v553, 16
    %v555 = vadd.s32 %v554, %v552
    %v556 = vand.u32 %v371, 65535
    %v557 = vshra.s32 %v371, 16
    %v558 = vcvt.s32.f32 %v556
    %v559 = vcvt.s32.f32 %v557
    %560 = vmin.xlane.f32.xlu0 %v559
    %v561 = vpop.xlane.xlu0 %560
    %vm562 = vcmp.eq.f32.partialorder %v559, %v561
    %v563 = vsel %vm562, %v558, inf
    %564 = vmin.xlane.f32.xlu0 %v563
    %v565 = vpop.xlane.xlu0 %564
    %v566 = vcvt.f32.s32 %v565
    %v567 = vcvt.f32.s32 %v561
    %v568 = vshll.u32 %v567, 16
    %v569 = vadd.s32 %v568, %v566
    %v570 = vand.u32 %v372, 65535
    %v571 = vshra.s32 %v372, 16
    %v572 = vcvt.s32.f32 %v570
    %v573 = vcvt.s32.f32 %v571
    %574 = vmin.xlane.f32.xlu0 %v573
    %v575 = vpop.xlane.xlu0 %574
    %vm576 = vcmp.eq.f32.partialorder %v573, %v575
    %v577 = vsel %vm576, %v572, inf
    %578 = vmin.xlane.f32.xlu0 %v577
    %v579 = vpop.xlane.xlu0 %578
    %v580 = vcvt.f32.s32 %v579
    %v581 = vcvt.f32.s32 %v575
    %v582 = vshll.u32 %v581, 16
    %v583 = vadd.s32 %v582, %v580
    %v584 = vand.u32 %v373, 65535
    %v585 = vshra.s32 %v373, 16
    %v586 = vcvt.s32.f32 %v584
    %v587 = vcvt.s32.f32 %v585
    %588 = vmin.xlane.f32.xlu0 %v587
    %v589 = vpop.xlane.xlu0 %588
    %vm590 = vcmp.eq.f32.partialorder %v587, %v589
    %v591 = vsel %vm590, %v586, inf
    %592 = vmin.xlane.f32.xlu0 %v591
    %v593 = vpop.xlane.xlu0 %592
    %v594 = vcvt.f32.s32 %v593
    %v595 = vcvt.f32.s32 %v589
    %v596 = vshll.u32 %v595, 16
    %v597 = vadd.s32 %v596, %v594
    %vm598 = vcmp.eq.s32.totalorder %v309, %v387
    %vm599 = vcmp.eq.s32.totalorder %v309, %v401
    %vm600 = vcmp.eq.s32.totalorder %v309, %v415
    %vm601 = vcmp.eq.s32.totalorder %v309, %v429
    %vm602 = vcmp.eq.s32.totalorder %v309, %v443
    %vm603 = vcmp.eq.s32.totalorder %v309, %v457
    %vm604 = vcmp.eq.s32.totalorder %v309, %v471
    %vm605 = vcmp.eq.s32.totalorder %v309, %v485
    %vm606 = vcmp.eq.s32.totalorder %v309, %v499
    %vm607 = vcmp.eq.s32.totalorder %v309, %v513
    %vm608 = vcmp.eq.s32.totalorder %v309, %v527
    %vm609 = vcmp.eq.s32.totalorder %v309, %v541
    %vm610 = vcmp.eq.s32.totalorder %v309, %v555
    %vm611 = vcmp.eq.s32.totalorder %v309, %v569
    %vm612 = vcmp.eq.s32.totalorder %v309, %v583
    %vm613 = vcmp.eq.s32.totalorder %v309, %v597
    %v614 = vsel %vm598, 1, 0
    %v615 = vsel %vm599, 1, 0
    %v616 = vsel %vm600, 1, 0
    %v617 = vsel %vm601, 1, 0
    %v618 = vsel %vm602, 1, 0
    %v619 = vsel %vm603, 1, 0
    %v620 = vsel %vm604, 1, 0
    %v621 = vsel %vm605, 1, 0
    %v622 = vsel %vm606, 1, 0
    %v623 = vsel %vm607, 1, 0
    %v624 = vsel %vm608, 1, 0
    %v625 = vsel %vm609, 1, 0
    %v626 = vsel %vm610, 1, 0
    %v627 = vsel %vm611, 1, 0
    %v628 = vsel %vm612, 1, 0
    %v629 = vsel %vm613, 1, 0
    %v630 = vcvt.s32.f32 %v614
    %v631 = vcvt.s32.f32 %v615
    %v632 = vcvt.s32.f32 %v616
    %v633 = vcvt.s32.f32 %v617
    %v634 = vcvt.s32.f32 %v618
    %v635 = vcvt.s32.f32 %v619
    %v636 = vcvt.s32.f32 %v620
    %v637 = vcvt.s32.f32 %v621
    %v638 = vcvt.s32.f32 %v622
    %v639 = vcvt.s32.f32 %v623
    %v640 = vcvt.s32.f32 %v624
    %v641 = vcvt.s32.f32 %v625
    %v642 = vcvt.s32.f32 %v626
    %v643 = vcvt.s32.f32 %v627
    %v644 = vcvt.s32.f32 %v628
    %v645 = vcvt.s32.f32 %v629
    %v646 = vpack.c.bf16 %v631, %v630
    %v647 = vpack.c.bf16 %v633, %v632
    %v648 = vpack.c.bf16 %v635, %v634
    %v649 = vpack.c.bf16 %v637, %v636
    %v650 = vpack.c.bf16 %v639, %v638
    %v651 = vpack.c.bf16 %v641, %v640
    %v652 = vpack.c.bf16 %v643, %v642
    %v653 = vpack.c.bf16 %v645, %v644
    %v662 = vunpack.c.l.b16 %v646
    %v663 = vunpack.c.h.b16 %v646
    %v664 = vunpack.c.l.b16 %v647
    %v665 = vunpack.c.h.b16 %v647
    %v666 = vunpack.c.l.b16 %v648
    %v667 = vunpack.c.h.b16 %v648
    %v668 = vunpack.c.l.b16 %v649
    %v669 = vunpack.c.h.b16 %v649
    %v670 = vunpack.c.l.b16 %v650
    %v671 = vunpack.c.h.b16 %v650
    %v672 = vunpack.c.l.b16 %v651
    %v673 = vunpack.c.h.b16 %v651
    %v674 = vunpack.c.l.b16 %v652
    %v675 = vunpack.c.h.b16 %v652
    %v676 = vunpack.c.l.b16 %v653
    %v677 = vunpack.c.h.b16 %v653
    %v678 = vpack.c.b16 %v662, %v662
    %v679 = vpack.c.b16 %v663, %v663
    %v680 = vpack.c.b16 %v664, %v664
    %v681 = vpack.c.b16 %v665, %v665
    %v682 = vpack.c.b16 %v666, %v666
    %v683 = vpack.c.b16 %v667, %v667
    %v684 = vpack.c.b16 %v668, %v668
    %v685 = vpack.c.b16 %v669, %v669
    %v686 = vpack.c.b16 %v670, %v670
    %v687 = vpack.c.b16 %v671, %v671
    %v688 = vpack.c.b16 %v672, %v672
    %v689 = vpack.c.b16 %v673, %v673
    %v690 = vpack.c.b16 %v674, %v674
    %v691 = vpack.c.b16 %v675, %v675
    %v692 = vpack.c.b16 %v676, %v676
    %v693 = vpack.c.b16 %v677, %v677
    %710 = vst [vmem:[#allocation10] sm:$0xf] %v678
    %711 = vst [vmem:[#allocation10 + $0x4] sm:$0xf] %v679
    %712 = vst [vmem:[#allocation10 + $0x8] sm:$0xf] %v680
    %713 = vst [vmem:[#allocation10 + $0xc] sm:$0xf] %v681
    %714 = vst [vmem:[#allocation10 + $0x10] sm:$0xf] %v682
    %715 = vst [vmem:[#allocation10 + $0x14] sm:$0xf] %v683
    %716 = vst [vmem:[#allocation10 + $0x18] sm:$0xf] %v684
    %717 = vst [vmem:[#allocation10 + $0x1c] sm:$0xf] %v685
    %718 = vst [vmem:[#allocation10 + $0x20] sm:$0xf] %v686
    %719 = vst [vmem:[#allocation10 + $0x24] sm:$0xf] %v687
    %720 = vst [vmem:[#allocation10 + $0x28] sm:$0xf] %v688
    %721 = vst [vmem:[#allocation10 + $0x2c] sm:$0xf] %v689
    %722 = vst [vmem:[#allocation10 + $0x30] sm:$0xf] %v690
    %723 = vst [vmem:[#allocation10 + $0x34] sm:$0xf] %v691
    %724 = vst [vmem:[#allocation10 + $0x38] sm:$0xf] %v692
    %725 = vst [vmem:[#allocation10 + $0x3c] sm:$0xf] %v693
    %vm726 = vcmask 7168
    %727 = vst.msk [vmem:[#allocation11] sm:$0xff] %vm726, %v387
    %728 = vst.msk [vmem:[#allocation11 + $0x8] sm:$0xff] %vm726, %v401
    %729 = vst.msk [vmem:[#allocation11 + $0x10] sm:$0xff] %vm726, %v415
    %730 = vst.msk [vmem:[#allocation11 + $0x18] sm:$0xff] %vm726, %v429
    %731 = vst.msk [vmem:[#allocation11 + $0x20] sm:$0xff] %vm726, %v443
    %732 = vst.msk [vmem:[#allocation11 + $0x28] sm:$0xff] %vm726, %v457
    %733 = vst.msk [vmem:[#allocation11 + $0x30] sm:$0xff] %vm726, %v471
    %734 = vst.msk [vmem:[#allocation11 + $0x38] sm:$0xff] %vm726, %v485
    %735 = vst.msk [vmem:[#allocation11 + $0x40] sm:$0xff] %vm726, %v499
    %736 = vst.msk [vmem:[#allocation11 + $0x48] sm:$0xff] %vm726, %v513
    %737 = vst.msk [vmem:[#allocation11 + $0x50] sm:$0xff] %vm726, %v527
    %738 = vst.msk [vmem:[#allocation11 + $0x58] sm:$0xff] %vm726, %v541
    %739 = vst.msk [vmem:[#allocation11 + $0x60] sm:$0xff] %vm726, %v555
    %740 = vst.msk [vmem:[#allocation11 + $0x68] sm:$0xff] %vm726, %v569
    %741 = vst.msk [vmem:[#allocation11 + $0x70] sm:$0xff] %vm726, %v583
    %742 = vst.msk [vmem:[#allocation11 + $0x78] sm:$0xff] %vm726, %v597
    // Predicated region
    $region34: #{tpu_custom_call.1} parent=1 // pred_check
      _
    $region35: #{tpu_custom_call.1} parent=1 // pred_check_branch
      %744 = sbr.rel (0) target = $region37
    $region36: #{tpu_custom_call.1} parent=1 // pred_region
      %s746 = ssub.s32 1024, 128
      %747 = vsyncadd [#allocation4], %s746
      %s748 = sshll.u32 [#allocation10], 4
      %s749 = int_to_ptr.vmem [resolvable:$true] %s748
      %754 = dma.vmem_to_hbm [thread:$0]  %s749, 128, %s4, [#allocation4], 64, 64, 4
    $region37: #{tpu_custom_call.1} parent=1 // pred_fallthru
      _
    // Predicated region
    $region38: #{tpu_custom_call.1} parent=1 // pred_check
      _
    $region39: #{tpu_custom_call.1} parent=1 // pred_check_branch
      %756 = sbr.rel (0) target = $region41
    $region40: #{tpu_custom_call.1} parent=1 // pred_region
      %s758 = ssub.s32 2048, 256
      %759 = vsyncadd [#allocation12], %s758
      %s760 = sshll.u32 [#allocation11], 4
      %s761 = int_to_ptr.vmem [resolvable:$true] %s760
      %766 = dma.vmem_to_hbm [thread:$0]  %s761, 256, %s5, [#allocation12], 128, 128, 8
    $region41: #{tpu_custom_call.1} parent=1 // pred_fallthru
      _
    // Predicated region
    $region42: #{tpu_custom_call.1} parent=1 // pred_check
      _
    $region43: #{tpu_custom_call.1} parent=1 // pred_check_branch
      %768 = sbr.rel (0) target = $region45
    $region44: #{tpu_custom_call.1} parent=1 // pred_region
      %769 = dma.done [#allocation4], 1024
    $region45: #{tpu_custom_call.1} parent=1 // pred_fallthru
      _
    // Predicated region
    $region46: #{tpu_custom_call.1} parent=1 // pred_check
      _
    $region47: #{tpu_custom_call.1} parent=1 // pred_check_branch
      %771 = sbr.rel (0) target = $region49
    $region48: #{tpu_custom_call.1} parent=1 // pred_region
      %772 = dma.done [#allocation12], 2048
    $region49: #{tpu_custom_call.1} parent=1 // pred_fallthru
      _
    %773 = vsyncpa [#allocation3], 1
    %774 = vsyncpa [#allocation6], 1
    %775 = vsyncpa [#allocation9], 1
    %776 = vsyncpa [#allocation4], 1
    %777 = vsyncpa [#allocation12], 1

</llo_original>
